<compile_context>
chip_gen: v5e
topology: v5e:2x2
jax: 0.10.0
libtpu: 0.0.40
codegen_flags: <defaults>
</compile_context>

<pallas_src>
import functools

import jax
import jax.numpy as jnp
from jax.experimental import pallas as pl
from jax.experimental.pallas import tpu as pltpu

_LANES = 128
_SUBLANES = 8


def _padding_cached_kernel(pad_ref, x_ref, y_ref, newbuf_ref, *, padding, t):
    # Blocks are 2-D: (row_tile, time). Rows = folded (batch, channel).
    pad = pad_ref[...]
    # Pad slab: destination lane offset 0 -> aligned, unmasked stores.
    y_ref[:, :padding] = pad

    # x slab: its destination in y starts at lane offset `padding`.
    k = (-padding) % _LANES  # columns until the next 128-lane boundary of y
    if k == 0 or t <= k:
        # Already lane-aligned (padding % 128 == 0) or too short to split.
        y_ref[:, padding:] = x_ref[...]
    else:
        # Small masked store up to the lane boundary ...
        y_ref[:, padding:padding + k] = x_ref[:, :k]
        # ... then the bulk of x onto a lane-aligned destination.  The source
        # load is the misaligned side instead, using the wider vld issue width
        # rather than the single vst slot.
        y_ref[:, padding + k:] = x_ref[:, k:]

    # New state = last `padding` samples of the logical concat.
    if t >= padding:
        newbuf_ref[...] = x_ref[:, t - padding:]
    else:
        newbuf_ref[:, :padding - t] = pad[:, t:]
        newbuf_ref[:, padding - t:] = x_ref[...]


def _vmem_capacity_bytes():
    try:
        return int(pltpu.get_tpu_info().vmem_capacity_bytes)
    except Exception:
        return 64 * 1024 * 1024  # conservative default: v7x per-TensorCore VMEM


def _round_up(x, m):
    return (x + m - 1) // m * m


def _choose_row_tile(rows, row_bytes, budget_bytes):
    """Row tile: multiple of 8 sublanes (or the full row count), big enough to
    amortize per-step overhead, small enough that double-buffered blocks fit the
    budget, split into >= 2 blocks when possible for megacore / pipelining."""
    max_rows = (budget_bytes // (2 * max(row_bytes, 1))) // _SUBLANES * _SUBLANES
    max_rows = max(max_rows, _SUBLANES)
    if rows <= max_rows:
        if rows >= 2 * _SUBLANES:
            # At least two blocks: v7x megacore sharding + DMA/writeback overlap.
            return min(max_rows, _round_up(-(-rows // 2), _SUBLANES))
        return rows  # tiny problem: single full block
    return max_rows


def padding_cached_forward(x, pad_buf, padding, *, use_pallas=None, row_tile=None):
    """Functional equivalent of PaddingCached.forward.

    Returns (y, new_pad_buf); new_pad_buf is the updated state buffer.
    """
    assert x.ndim == 3
    assert padding > 0
    bs, n_ch, t = x.shape
    assert pad_buf.shape[1] == n_ch and pad_buf.shape[2] == padding
    assert pad_buf.shape[0] in (1, bs), "pad_buf batch must be 1 or match x batch"

    # NOTE: if dtypes differ this cast copies, so the "in-place" alias below is
    # onto the cast copy rather than the caller's original buffer (still
    # functionally correct).
    pad_buf = pad_buf.astype(x.dtype)

    rows = bs * n_ch
    out_len = padding + t
    itemsize = jnp.dtype(x.dtype).itemsize
    # Per-row bytes of all live blocks in one grid step: pad + x + y + newbuf.
    row_bytes = (3 * padding + 2 * t) * itemsize

    vmem_cap = _vmem_capacity_bytes()
    budget = min(vmem_cap // 2, 32 * 1024 * 1024)  # live double-buffered blocks
    hard_cap = vmem_cap - 8 * 1024 * 1024          # absolute ceiling w/ headroom

    if use_pallas is None:
        use_pallas = rows * out_len >= 8 * 128 * 64
    if 2 * _SUBLANES * row_bytes > hard_cap:
        # Even an 8-row block would overflow VMEM (extremely large T).
        # TODO(synk): add a time-tiling grid axis (pl.when-gated pad prepend /
        # newbuf tail) for this regime instead of falling back to XLA.
        use_pallas = False

    if not use_pallas:
        pb = pad_buf if pad_buf.shape[0] == bs else jnp.broadcast_to(
            pad_buf, (bs, n_ch, padding))
        y = jnp.concatenate([pb, x], axis=-1)
        return y, y[..., -padding:]

    r_tile = int(row_tile) if row_tile is not None else _choose_row_tile(
        rows, row_bytes, budget)
    r_tile = min(r_tile, rows)
    if r_tile != rows:
        r_tile = max(_SUBLANES, (r_tile // _SUBLANES) * _SUBLANES)
    grid = (pl.cdiv(rows, r_tile),)

    # Fold batch x channel into one dense row axis (free reshape: collapsing
    # the leading dims of a row-major array).
    x2 = x.reshape(rows, t)

    if pad_buf.shape[0] == bs or bs == 1:
        pad2 = pad_buf.reshape(rows, padding)
        pad_idx = lambda r: (r, 0)
    elif n_ch % r_tile == 0:
        # Batch-1 buffer broadcast over batch purely via the index_map: row
        # block r of x maps to pad block r mod (n_ch / r_tile).  No HBM copy;
        # with r_tile == n_ch the pad block index is constant (fetched once).
        pad2 = pad_buf.reshape(n_ch, padding)
        nblk = n_ch // r_tile
        pad_idx = lambda r: (r % nblk, 0)
    else:
        # Materialize the repeat (exactly what the torch module does); padding
        # is small so this copy is negligible.
        pad2 = jnp.broadcast_to(pad_buf, (bs, n_ch, padding)).reshape(rows, padding)
        pad_idx = lambda r: (r, 0)

    # In-place state update: alias the full-extent buffer onto the new-buffer
    # output when shapes match.
    aliases = {0: 1} if pad2.shape == (rows, padding) else {}

    kernel = functools.partial(_padding_cached_kernel, padding=padding, t=t)

    bytes_accessed = (rows * (padding + t)          # read pad + x
                      + rows * (out_len + padding)  # write y + newbuf
                      ) * itemsize
    live_bytes = 2 * r_tile * row_bytes
    vmem_limit = int(min(vmem_cap * 3 // 4,
                         max(32 * 1024 * 1024, live_bytes + 16 * 1024 * 1024)))

    y2, newbuf2 = pl.pallas_call(
        kernel,
        grid=grid,
        in_specs=[
            pl.BlockSpec((r_tile, padding), pad_idx),
            pl.BlockSpec((r_tile, t), lambda r: (r, 0)),
        ],
        out_specs=(
            pl.BlockSpec((r_tile, out_len), lambda r: (r, 0)),
            pl.BlockSpec((r_tile, padding), lambda r: (r, 0)),
        ),
        out_shape=(
            jax.ShapeDtypeStruct((rows, out_len), x.dtype),
            jax.ShapeDtypeStruct((rows, padding), x.dtype),
        ),
        input_output_aliases=aliases,
        compiler_params=pltpu.CompilerParams(
            dimension_semantics=("parallel",),
            vmem_limit_bytes=vmem_limit),
        cost_estimate=pl.CostEstimate(
            flops=0, transcendentals=0, bytes_accessed=int(bytes_accessed)),
    )(pad2, x2)

    return y2.reshape(bs, n_ch, out_len), newbuf2.reshape(bs, n_ch, padding)


if __name__ == "__main__":
    key = jax.random.PRNGKey(0)

    def ref_forward(x, pad_buf, padding):
        bs = x.shape[0]
        pb = pad_buf if pad_buf.shape[0] == bs else jnp.broadcast_to(
            pad_buf, (bs,) + pad_buf.shape[1:])
        y = jnp.concatenate([pb, x], axis=-1)
        return y, y[..., -padding:]

    # Module config (matches __init__: zeros buffer).
    n_ch, padding = 4, 4
    bs, t = 2, 16
    k1, k2, k3, k4 = jax.random.split(key, 4)
    x = jax.random.normal(k1, (bs, n_ch, t), dtype=jnp.float32)
    pad_buf = jnp.zeros((1, n_ch, padding), dtype=jnp.float32)

    # 1) First call: zero batch-1 buffer (broadcast), forced kernel path.
    y, new_buf = padding_cached_forward(x, pad_buf, padding, use_pallas=True)
    y = jax.block_until_ready(y)
    new_buf = jax.block_until_ready(new_buf)
    ry, rb = ref_forward(x, pad_buf, padding)
    assert y.shape == (bs, n_ch, padding + t)
    assert new_buf.shape == (bs, n_ch, padding)
    assert jnp.allclose(y, ry) and jnp.allclose(new_buf, rb)

    # 2) Second call: cached buffer with batch == bs (aliased in-place update).
    y2, new_buf2 = padding_cached_forward(x, new_buf, padding, use_pallas=True)
    jax.block_until_ready(y2)
    ry2, rb2 = ref_forward(x, rb, padding)
    assert jnp.allclose(y2, ry2) and jnp.allclose(new_buf2, rb2)

    # 3) Short input (T < padding): exercises the pad-tail branch.
    x3 = jax.random.normal(k2, (bs, n_ch, 2), dtype=jnp.float32)
    y3, new_buf3 = padding_cached_forward(x3, new_buf2, padding, use_pallas=True)
    jax.block_until_ready(y3)
    ry3, rb3 = ref_forward(x3, rb2, padding)
    assert jnp.allclose(y3, ry3) and jnp.allclose(new_buf3, rb3)

    # 4) Ragged row count vs row tile (partial last block + aliased newbuf).
    bs4, t4 = 3, 16
    x4 = jax.random.normal(k3, (bs4, n_ch, t4), dtype=jnp.float32)
    buf4 = jax.random.normal(k4, (bs4, n_ch, padding), dtype=jnp.float32)
    y4, new_buf4 = padding_cached_forward(x4, buf4, padding,
                                          use_pallas=True, row_tile=8)
    jax.block_until_ready(y4)
    ry4, rb4 = ref_forward(x4, buf4, padding)
    assert jnp.allclose(y4, ry4) and jnp.allclose(new_buf4, rb4)

    # 5) Lane-boundary split-store path (T > 128 - padding % 128) plus the
    #    modular batch-1-broadcast index_map (n_ch divisible by the row tile).
    n_ch5, bs5, t5, pad5 = 16, 2, 200, 4
    x5 = jax.random.normal(jax.random.PRNGKey(5), (bs5, n_ch5, t5),
                           dtype=jnp.float32)
    buf5 = jax.random.normal(jax.random.PRNGKey(6), (1, n_ch5, pad5),
                             dtype=jnp.float32)
    y5, new_buf5 = padding_cached_forward(x5, buf5, pad5,
                                          use_pallas=True, row_tile=8)
    jax.block_until_ready(y5)
    ry5, rb5 = ref_forward(x5, buf5, pad5)
    assert jnp.allclose(y5, ry5) and jnp.allclose(new_buf5, rb5)

    print("KERNEL_OK")
</pallas_src>

<mosaic_0001>
module attributes {stable_mosaic.version = 11 : i64} {
  func.func @_padding_cached_kernel(%arg0: i32, %arg1: memref<8x4xf32, #tpu.memory_space<vmem>>, %arg2: memref<8x16xf32, #tpu.memory_space<vmem>>, %arg3: memref<8x20xf32, #tpu.memory_space<vmem>>, %arg4: memref<8x4xf32, #tpu.memory_space<vmem>>) attributes {dimension_semantics = [#tpu.dimension_semantics<parallel>], iteration_bounds = array<i64: 1>, scalar_prefetch = 0 : i64, scratch_operands = 0 : i64, tpu.core_type = #tpu.core_type<tc>, window_params = [{transform_indices = @transform_0, window_bounds = array<i64: 8, 4>}, {transform_indices = @transform_1, window_bounds = array<i64: 8, 16>}, {transform_indices = @transform_2, window_bounds = array<i64: 8, 20>}, {transform_indices = @transform_3, window_bounds = array<i64: 8, 4>}]} {
    %c0 = arith.constant 0 : index
    %c0_0 = arith.constant 0 : index
    %0 = vector.load %arg1[%c0, %c0_0] : memref<8x4xf32, #tpu.memory_space<vmem>>, vector<8x4xf32>
    %c0_1 = arith.constant 0 : index
    %c0_2 = arith.constant 0 : index
    %1 = vector.load %arg3[%c0_1, %c0_2] : memref<8x20xf32, #tpu.memory_space<vmem>>, vector<8x4xf32>
    tpu.vector_store %arg3[%c0_1, %c0_2], %0 {strides = array<i32>} : memref<8x20xf32, #tpu.memory_space<vmem>>, vector<8x4xf32>,
    %c0_3 = arith.constant 0 : index
    %c0_4 = arith.constant 0 : index
    %2 = vector.load %arg2[%c0_3, %c0_4] : memref<8x16xf32, #tpu.memory_space<vmem>>, vector<8x16xf32>
    %c0_5 = arith.constant 0 : index
    %c4 = arith.constant 4 : index
    %3 = vector.load %arg3[%c0_5, %c4] : memref<8x20xf32, #tpu.memory_space<vmem>>, vector<8x16xf32>
    tpu.vector_store %arg3[%c0_5, %c4], %2 {strides = array<i32>} : memref<8x20xf32, #tpu.memory_space<vmem>>, vector<8x16xf32>,
    %c0_6 = arith.constant 0 : index
    %c12 = arith.constant 12 : index
    %4 = vector.load %arg2[%c0_6, %c12] : memref<8x16xf32, #tpu.memory_space<vmem>>, vector<8x4xf32>
    %c0_7 = arith.constant 0 : index
    %c0_8 = arith.constant 0 : index
    %5 = vector.load %arg4[%c0_7, %c0_8] : memref<8x4xf32, #tpu.memory_space<vmem>>, vector<8x4xf32>
    tpu.vector_store %arg4[%c0_7, %c0_8], %4 {strides = array<i32>} : memref<8x4xf32, #tpu.memory_space<vmem>>, vector<8x4xf32>,
    return
  }
  func.func @transform_0(%arg0: i32) -> (i32, i32) {
    %c0_i32 = arith.constant 0 : i32
    %c0_i32_0 = arith.constant 0 : i32
    return %arg0, %c0_i32 : i32, i32
  }
  func.func @transform_1(%arg0: i32) -> (i32, i32) {
    %c0_i32 = arith.constant 0 : i32
    %c0_i32_0 = arith.constant 0 : i32
    return %arg0, %c0_i32 : i32, i32
  }
  func.func @transform_2(%arg0: i32) -> (i32, i32) {
    %c0_i32 = arith.constant 0 : i32
    %c0_i32_0 = arith.constant 0 : i32
    return %arg0, %c0_i32 : i32, i32
  }
  func.func @transform_3(%arg0: i32) -> (i32, i32) {
    %c0_i32 = arith.constant 0 : i32
    %c0_i32_0 = arith.constant 0 : i32
    return %arg0, %c0_i32 : i32, i32
  }
}

</mosaic_0001>

<llo_original>
// kernel: tpu_custom_call.1
$region0: #{tpu_custom_call.1}
  #allocation0 [shape = 'u32[]', space=smem, size = 0x4, offset = 0x4, fixed_abs, tag = 'smem constant byte address 0x4 - core index']
  #allocation1 [shape = 'u32[72,128]{1,0:T(1,128)}', space=vmem, size = 0x9000, scoped, tag = 'internal scratch']
  %s0 = inlined_call_operand.vmem [shape: f32[8,4], index: 0, kind: input, shape index: {}, may-alias: {0,3}]
  %s1 = inlined_call_operand.vmem [shape: f32[8,16], index: 1, kind: input, shape index: {}]
  %s2 = inlined_call_operand.hbm [shape: f32[8,20], index: 2, kind: output, shape index: {0}]
  %s3 = inlined_call_operand.vmem [shape: f32[8,4], index: 3, kind: output, shape index: {1}, may-alias: {0,3}]
  %4 = xla_tuple %s2, %s3
  %s5 = sld [smem:[#allocation0]]
  $region26: #{tpu_custom_call.1} parent=0
    _
  %s7 = ssub.s32 1, %s5
  %s8 = scalar_select 0, %s7, %s5
  $region1: #{tpu_custom_call.1} parent=0
    #allocation2 [shape = 'u8[4096]{0}', space=vmem, size = 0x1000, scoped, tag = 'output window, operand 0, single buffered']
    #allocation3 [shape = 's32[1]{0}', space=sflag, size = 0x4, scoped, tag = 'scoped memory for tpu_custom_call.1']
    %9 = vsyncpa [#allocation3], 0
    // Predicated region
    $region2: #{tpu_custom_call.1} parent=1 // pred_check
      _
    $region3: #{tpu_custom_call.1} parent=1 // pred_check_branch
      %11 = sbr.rel (0) target = $region5
    $region4: #{tpu_custom_call.1} parent=1 // pred_region
      _
    $region5: #{tpu_custom_call.1} parent=1 // pred_fallthru
      _
    // Predicated region
    $region6: #{tpu_custom_call.1} parent=1 // pred_check
      _
    $region7: #{tpu_custom_call.1} parent=1 // pred_check_branch
      %13 = sbr.rel (0) target = $region9
    $region8: #{tpu_custom_call.1} parent=1 // pred_region
      _
    $region9: #{tpu_custom_call.1} parent=1 // pred_fallthru
      _
    %v14 = vld [vmem:[%s0] sm:$0xff]
    %vm15 = vcmask 31744
    %16 = vst.msk [vmem:[#allocation2] sm:$0xff] %vm15, %v14
    %v17 = vld [vmem:[%s1] sm:$0xff]
    %19 = vrot.lane.b32.xlu0 %v17, 4
    %v20 = vpop.permute.xlu0 %19
    %vm22 = vcmask 162848
    %23 = vst.msk [vmem:[#allocation2] sm:$0xff] %vm22, %v20
    %v24 = vld [vmem:[%s1] sm:$0xff]
    %26 = vrot.lane.b32.xlu0 %v24, 116
    %v27 = vpop.permute.xlu0 %26
    %29 = vst.msk [vmem:[%s3] sm:$0xff] %vm15, %v27
    // Predicated region
    $region10: #{tpu_custom_call.1} parent=1 // pred_check
      _
    $region11: #{tpu_custom_call.1} parent=1 // pred_check_branch
      %31 = sbr.rel (0) target = $region13
    $region12: #{tpu_custom_call.1} parent=1 // pred_region
      %33 = vsyncadd [#allocation3], 0
      %s35 = sshll.u32 [#allocation2], 4
      %s36 = int_to_ptr.vmem [resolvable:$true] %s35
      %s37 = sshll.u32 %s2, 4
      %s38 = int_to_ptr.hbm [resolvable:$true] %s37
      %40 = dma.vmem_to_hbm [thread:$0]  %s36, 128, %s38, [#allocation3]
    $region13: #{tpu_custom_call.1} parent=1 // pred_fallthru
      _
    // Predicated region
    $region14: #{tpu_custom_call.1} parent=1 // pred_check
      _
    $region15: #{tpu_custom_call.1} parent=1 // pred_check_branch
      %42 = sbr.rel (0) target = $region17
    $region16: #{tpu_custom_call.1} parent=1 // pred_region
      _
    $region17: #{tpu_custom_call.1} parent=1 // pred_fallthru
      _
    // Predicated region
    $region18: #{tpu_custom_call.1} parent=1 // pred_check
      _
    $region19: #{tpu_custom_call.1} parent=1 // pred_check_branch
      %44 = sbr.rel (0) target = $region21
    $region20: #{tpu_custom_call.1} parent=1 // pred_region
      %46 = dma.done [#allocation3], 128
    $region21: #{tpu_custom_call.1} parent=1 // pred_fallthru
      _
    // Predicated region
    $region22: #{tpu_custom_call.1} parent=1 // pred_check
      _
    $region23: #{tpu_custom_call.1} parent=1 // pred_check_branch
      %48 = sbr.rel (0) target = $region25
    $region24: #{tpu_custom_call.1} parent=1 // pred_region
      _
    $region25: #{tpu_custom_call.1} parent=1 // pred_fallthru
      _
    %49 = vsyncpa [#allocation3], 1

</llo_original>
